<compile_context>
chip_gen: v5e
topology: v5e:2x2
jax: 0.10.0
libtpu: 0.0.40
codegen_flags: <defaults>
</compile_context>

<pallas_src>
import jax
import jax.numpy as jnp
from jax.experimental import pallas as pl
from jax.experimental.pallas import tpu as pltpu

BN_EPS = 1e-5  # PyTorch BatchNorm1d default


def _round_up(n, m):
    return ((n + m - 1) // m) * m


# ---------------------------------------------------------------------------
# Kernel factory: fused 4-layer MLP chain (mu & sigma packed into the widths),
# batch on lanes.  `layout` = tuple of (row_offset, f_out, f_in) per layer.
# ---------------------------------------------------------------------------
def make_fused_kernel(layout):
    n_layers = len(layout)

    def kernel(x_ref, p_ref, o_ref):
        h = x_ref[...]                                         # (D_in, TB) f32
        for idx, (r, fo, fi) in enumerate(layout):
            w = p_ref[r:r + fo, 0:fi]                          # (fo, fi) W^T, static view
            b = p_ref[r:r + fo, fi:fi + 1]                     # (fo, 1) bias column
            h = jnp.dot(w, h, preferred_element_type=jnp.float32) + b
            if idx < n_layers - 1:
                h = jnp.maximum(h, 0.0)                        # ReLU (dropout = identity, eval)
        o_ref[...] = h.astype(o_ref.dtype)                     # (2, TB) lane-dense store

    return kernel


# ---------------------------------------------------------------------------
# Wrapper: single pallas_call, batch-on-lanes grid, one VMEM-resident slab.
# ---------------------------------------------------------------------------
def lognormal_helper_forward(src, packed, *, tile_b=4096, core_parallel=False):
    """pred = cat([mu_model(src).view(-1,1), sigma_model(src).view(-1,1)], dim=1)."""
    slab, layout = packed["slab"], packed["layout"]
    B, D_in = src.shape
    assert D_in == layout[0][2], (D_in, layout)

    # Lane-dense batch: Bp and tile_b are multiples of 128.  Small batches run
    # in one grid step; large ones tile (cap 8192 rows/step: ~0.5 KB VMEM/row,
    # comfortably under every generation's default scoped-VMEM limit).
    tile_b = max(128, min(_round_up(tile_b, 128), 8192))
    Bp = _round_up(B, 128)
    if Bp <= tile_b:
        tile_b = Bp
    else:
        Bp = _round_up(B, tile_b)
    grid = (Bp // tile_b,)

    # Put batch on lanes: (D_in, Bp).
    src_t = jnp.pad(src, ((0, Bp - B), (0, 0))).T

    n_out = layout[-1][1]                                      # = 2 (mu, pre_log_sigma)
    flops = 2 * Bp * sum(fo * fi for _, fo, fi in layout)
    bytes_accessed = 4 * (Bp * D_in + int(slab.size) + Bp * n_out)

    # On v7x set core_parallel=True (with a grid of >=2 steps) to shard the
    # batch axis across both TensorCores; plain "parallel" otherwise.
    sem = (pltpu.CORE_PARALLEL,) if core_parallel else ("parallel",)

    out = pl.pallas_call(
        make_fused_kernel(layout),
        out_shape=jax.ShapeDtypeStruct((n_out, Bp), jnp.float32),
        grid=grid,
        in_specs=[
            pl.BlockSpec((D_in, tile_b), lambda i: (0, i)),
            # One ~64 KB param slab, constant index map -> DMA'd HBM->VMEM once,
            # stays resident across all batch tiles.
            pl.BlockSpec(slab.shape, lambda i: (0, 0)),
        ],
        out_specs=pl.BlockSpec((n_out, tile_b), lambda i: (0, i)),
        compiler_params=pltpu.CompilerParams(dimension_semantics=sem),
        cost_estimate=pl.CostEstimate(flops=flops, transcendentals=0,
                                      bytes_accessed=bytes_accessed),
    )(src_t, slab)
    return out[:, :B].T                                        # (B, 2) for the caller


# ---------------------------------------------------------------------------
# Parameter construction (mimics nn.Linear / nn.BatchNorm1d, eval mode).
# ---------------------------------------------------------------------------
def init_linear(key, d_in, d_out):
    kw, kb = jax.random.split(key)
    bound = 1.0 / jnp.sqrt(jnp.float32(d_in))
    w = jax.random.uniform(kw, (d_in, d_out), jnp.float32, -bound, bound)
    b = jax.random.uniform(kb, (1, d_out), jnp.float32, -bound, bound)
    return w, b


def init_batchnorm(key, d):
    kg, kb, km, kv = jax.random.split(key, 4)
    gamma = jax.random.uniform(kg, (1, d), jnp.float32, 0.5, 1.5)
    beta = 0.1 * jax.random.normal(kb, (1, d), jnp.float32)
    mean = 0.1 * jax.random.normal(km, (1, d), jnp.float32)
    var = jax.random.uniform(kv, (1, d), jnp.float32, 0.5, 1.5)
    return gamma, beta, mean, var


def init_deepnet(key, d_in, d_out, hs, batchnorm):
    ks = jax.random.split(key, 7)
    dims = [d_in] + list(hs) + [d_out]
    p = {}
    for k in range(4):
        w, b = init_linear(ks[k], dims[k], dims[k + 1])
        p[f"w{k+1}"], p[f"b{k+1}"] = w, b
    if batchnorm:
        for k in range(3):
            g, beta, m, v = init_batchnorm(ks[4 + k], hs[k])
            p[f"g{k+1}"], p[f"beta{k+1}"], p[f"m{k+1}"], p[f"v{k+1}"] = g, beta, m, v
    return p


def _fold_bn(w, b, g, beta, m, v, eps=BN_EPS):
    """Fold eval-mode BatchNorm1d into the preceding (in,out) linear."""
    scale = g / jnp.sqrt(v + eps)                              # (1, out)
    return w * scale, (b - m) * scale + beta


def _block_diag(a, b):
    z_ab = jnp.zeros((a.shape[0], b.shape[1]), a.dtype)
    z_ba = jnp.zeros((b.shape[0], a.shape[1]), a.dtype)
    return jnp.concatenate([jnp.concatenate([a, z_ab], axis=1),
                            jnp.concatenate([z_ba, b], axis=1)], axis=0)


def pack_lognormal_params(mu_p, sg_p, batchnorm):
    """Fold eval-mode BN, fuse mu/sigma (layer-1 concat, layers 2-4 block-diag),
    transpose every layer, and pack [W_k^T | b_k] into ONE f32 slab.
    Returns {"slab": (rows, cols) array, "layout": ((row_off, f_out, f_in), ...)}."""
    def layers(p):
        out = []
        for k in (1, 2, 3):
            w, b = p[f"w{k}"], p[f"b{k}"]
            if batchnorm:
                w, b = _fold_bn(w, b, p[f"g{k}"], p[f"beta{k}"], p[f"m{k}"], p[f"v{k}"])
            out.append((w, b))
        out.append((p["w4"], p["b4"]))
        return out

    mu_l, sg_l = layers(mu_p), layers(sg_p)
    fused = [(jnp.concatenate([mu_l[0][0], sg_l[0][0]], axis=1),
              jnp.concatenate([mu_l[0][1], sg_l[0][1]], axis=1))]
    for k in (1, 2, 3):
        fused.append((_block_diag(mu_l[k][0], sg_l[k][0]),
                      jnp.concatenate([mu_l[k][1], sg_l[k][1]], axis=1)))

    rows = 0
    layout, blocks = [], []
    for w, b in fused:
        fi, fo = w.shape
        layout.append((rows, fo, fi))
        blocks.append((rows, jnp.concatenate([w.T, b.T], axis=1)))   # (fo, fi+1)
        rows += _round_up(fo, 8)                                     # 8-aligned row blocks
    n_rows = _round_up(rows, 8)
    n_cols = _round_up(max(fi for _, _, fi in layout) + 1, 128)

    slab = jnp.zeros((n_rows, n_cols), jnp.float32)
    for r, blk in blocks:
        slab = slab.at[r:r + blk.shape[0], :blk.shape[1]].set(blk)
    return {"slab": slab, "layout": tuple(layout)}


# ---------------------------------------------------------------------------
# Pure-JAX reference (explicit BN, un-fused) for the correctness check.
# ---------------------------------------------------------------------------
def ref_deepnet(x, p, batchnorm):
    def bn(z, k):
        return (z - p[f"m{k}"]) / jnp.sqrt(p[f"v{k}"] + BN_EPS) * p[f"g{k}"] + p[f"beta{k}"]
    h = x @ p["w1"] + p["b1"]
    if batchnorm:
        h = bn(h, 1)
    h = jnp.maximum(h, 0.0)
    h = h @ p["w2"] + p["b2"]
    if batchnorm:
        h = bn(h, 2)
    h = jnp.maximum(h, 0.0)
    h = h @ p["w3"] + p["b3"]
    if batchnorm:
        h = bn(h, 3)
    h = jnp.maximum(h, 0.0)
    return h @ p["w4"] + p["b4"]


def ref_lognormal(src, mu_p, sg_p, batchnorm):
    return jnp.concatenate([ref_deepnet(src, mu_p, batchnorm).reshape(-1, 1),
                            ref_deepnet(src, sg_p, batchnorm).reshape(-1, 1)], axis=1)


if __name__ == "__main__":
    # MIMICNN(dataset='gbsg', model_dist='lognormal'):
    #   hidden_sizes = [28, 14, 14], LogNormalhelper(D_in, 1, ..., batchnorm=True), eval mode.
    B, D_in, D_out = 16, 16, 1
    HS = [28, 14, 14]
    BATCHNORM = True

    key = jax.random.PRNGKey(0)
    k_x, k_mu, k_sg, k_x2 = jax.random.split(key, 4)
    src = jax.random.normal(k_x, (B, D_in), jnp.float32)
    mu_p = init_deepnet(k_mu, D_in, D_out, HS, BATCHNORM)
    sg_p = init_deepnet(k_sg, D_in, D_out, HS, BATCHNORM)

    packed = pack_lognormal_params(mu_p, sg_p, BATCHNORM)

    # Small batch: single grid step (Bp = tile_b = 128 lanes).
    pred = lognormal_helper_forward(src, packed)
    pred = jax.block_until_ready(pred)
    assert pred.shape == (B, 2), pred.shape
    ref = ref_lognormal(src, mu_p, sg_p, BATCHNORM)
    err = float(jnp.max(jnp.abs(pred - ref)))
    assert jnp.allclose(pred, ref, atol=1e-4, rtol=1e-4), err

    # Larger batch with tile_b=128 to exercise the multi-step grid path.
    B2 = 300
    src2 = jax.random.normal(k_x2, (B2, D_in), jnp.float32)
    pred2 = jax.block_until_ready(lognormal_helper_forward(src2, packed, tile_b=128))
    ref2 = ref_lognormal(src2, mu_p, sg_p, BATCHNORM)
    err2 = float(jnp.max(jnp.abs(pred2 - ref2)))
    assert pred2.shape == (B2, 2) and jnp.allclose(pred2, ref2, atol=1e-4, rtol=1e-4), err2

    print("KERNEL_OK")
</pallas_src>

<mosaic_0001>
module attributes {stable_mosaic.version = 11 : i64} {
  func.func @kernel(%arg0: i32, %arg1: memref<16x128xf32, #tpu.memory_space<vmem>>, %arg2: memref<128x128xf32, #tpu.memory_space<vmem>>, %arg3: memref<2x128xf32, #tpu.memory_space<vmem>>) attributes {dimension_semantics = [#tpu.dimension_semantics<parallel>], iteration_bounds = array<i64: 1>, scalar_prefetch = 0 : i64, scratch_operands = 0 : i64, tpu.core_type = #tpu.core_type<tc>, window_params = [{transform_indices = @transform_0, window_bounds = array<i64: 16, 128>}, {pipeline_mode = #tpu.pipeline_mode<synchronous>, transform_indices = @transform_1, window_bounds = array<i64: 128, 128>}, {transform_indices = @transform_2, window_bounds = array<i64: 2, 128>}]} {
    %c0 = arith.constant 0 : index
    %c0_0 = arith.constant 0 : index
    %0 = vector.load %arg1[%c0, %c0_0] : memref<16x128xf32, #tpu.memory_space<vmem>>, vector<16x128xf32>
    %c0_1 = arith.constant 0 : index
    %c0_2 = arith.constant 0 : index
    %1 = vector.load %arg2[%c0_1, %c0_2] : memref<128x128xf32, #tpu.memory_space<vmem>>, vector<56x16xf32>
    %c0_3 = arith.constant 0 : index
    %c16 = arith.constant 16 : index
    %2 = vector.load %arg2[%c0_3, %c16] : memref<128x128xf32, #tpu.memory_space<vmem>>, vector<56x1xf32>
    %cst = arith.constant dense<0.000000e+00> : vector<56x128xf32>
    %3 = tpu.matmul %1, %0, %cst {dimension_numbers = #tpu.dot_dimension_numbers<[1], [0], [0], [1], [0, 0, 1, 1], [], []>} : vector<56x16xf32>, vector<16x128xf32>, vector<56x128xf32> -> vector<56x128xf32>
    %4 = vector.broadcast %2 : vector<56x1xf32> to vector<56x128xf32>
    %5 = arith.addf %3, %4 : vector<56x128xf32>
    %cst_4 = arith.constant 0.000000e+00 : f32
    %6 = vector.broadcast %cst_4 : f32 to vector<56x128xf32>
    %7 = arith.maximumf %5, %6 : vector<56x128xf32>
    %c56 = arith.constant 56 : index
    %c0_5 = arith.constant 0 : index
    %8 = vector.load %arg2[%c56, %c0_5] : memref<128x128xf32, #tpu.memory_space<vmem>>, vector<28x56xf32>
    %c56_6 = arith.constant 56 : index
    %c56_7 = arith.constant 56 : index
    %9 = vector.load %arg2[%c56_6, %c56_7] : memref<128x128xf32, #tpu.memory_space<vmem>>, vector<28x1xf32>
    %cst_8 = arith.constant dense<0.000000e+00> : vector<28x128xf32>
    %10 = tpu.matmul %8, %7, %cst_8 {dimension_numbers = #tpu.dot_dimension_numbers<[1], [0], [0], [1], [0, 0, 1, 1], [], []>} : vector<28x56xf32>, vector<56x128xf32>, vector<28x128xf32> -> vector<28x128xf32>
    %11 = vector.broadcast %9 : vector<28x1xf32> to vector<28x128xf32>
    %12 = arith.addf %10, %11 : vector<28x128xf32>
    %cst_9 = arith.constant 0.000000e+00 : f32
    %13 = vector.broadcast %cst_9 : f32 to vector<28x128xf32>
    %14 = arith.maximumf %12, %13 : vector<28x128xf32>
    %c88 = arith.constant 88 : index
    %c0_10 = arith.constant 0 : index
    %15 = vector.load %arg2[%c88, %c0_10] : memref<128x128xf32, #tpu.memory_space<vmem>>, vector<28x28xf32>
    %c88_11 = arith.constant 88 : index
    %c28 = arith.constant 28 : index
    %16 = vector.load %arg2[%c88_11, %c28] : memref<128x128xf32, #tpu.memory_space<vmem>>, vector<28x1xf32>
    %cst_12 = arith.constant dense<0.000000e+00> : vector<28x128xf32>
    %17 = tpu.matmul %15, %14, %cst_12 {dimension_numbers = #tpu.dot_dimension_numbers<[1], [0], [0], [1], [0, 0, 1, 1], [], []>} : vector<28x28xf32>, vector<28x128xf32>, vector<28x128xf32> -> vector<28x128xf32>
    %18 = vector.broadcast %16 : vector<28x1xf32> to vector<28x128xf32>
    %19 = arith.addf %17, %18 : vector<28x128xf32>
    %cst_13 = arith.constant 0.000000e+00 : f32
    %20 = vector.broadcast %cst_13 : f32 to vector<28x128xf32>
    %21 = arith.maximumf %19, %20 : vector<28x128xf32>
    %c120 = arith.constant 120 : index
    %c0_14 = arith.constant 0 : index
    %22 = vector.load %arg2[%c120, %c0_14] : memref<128x128xf32, #tpu.memory_space<vmem>>, vector<2x28xf32>
    %c120_15 = arith.constant 120 : index
    %c28_16 = arith.constant 28 : index
    %23 = vector.load %arg2[%c120_15, %c28_16] : memref<128x128xf32, #tpu.memory_space<vmem>>, vector<2x1xf32>
    %cst_17 = arith.constant dense<0.000000e+00> : vector<2x128xf32>
    %24 = tpu.matmul %22, %21, %cst_17 {dimension_numbers = #tpu.dot_dimension_numbers<[1], [0], [0], [1], [0, 0, 1, 1], [], []>} : vector<2x28xf32>, vector<28x128xf32>, vector<2x128xf32> -> vector<2x128xf32>
    %25 = vector.broadcast %23 : vector<2x1xf32> to vector<2x128xf32>
    %26 = arith.addf %24, %25 : vector<2x128xf32>
    %c0_18 = arith.constant 0 : index
    %c0_19 = arith.constant 0 : index
    %27 = vector.load %arg3[%c0_18, %c0_19] : memref<2x128xf32, #tpu.memory_space<vmem>>, vector<2x128xf32>
    tpu.vector_store %arg3[%c0_18, %c0_19], %26 {strides = array<i32>} : memref<2x128xf32, #tpu.memory_space<vmem>>, vector<2x128xf32>,
    return
  }
  func.func @transform_0(%arg0: i32) -> (i32, i32) {
    %c0_i32 = arith.constant 0 : i32
    %c0_i32_0 = arith.constant 0 : i32
    return %c0_i32, %arg0 : i32, i32
  }
  func.func @transform_1(%arg0: i32) -> (i32, i32) {
    %c0_i32 = arith.constant 0 : i32
    %c0_i32_0 = arith.constant 0 : i32
    %c0_i32_1 = arith.constant 0 : i32
    return %c0_i32, %c0_i32_0 : i32, i32
  }
  func.func @transform_2(%arg0: i32) -> (i32, i32) {
    %c0_i32 = arith.constant 0 : i32
    %c0_i32_0 = arith.constant 0 : i32
    return %c0_i32, %arg0 : i32, i32
  }
}

</mosaic_0001>

<llo_original>
// kernel: tpu_custom_call.1
$region0: #{tpu_custom_call.1}
  #allocation0 [shape = 'u32[]', space=smem, size = 0x4, offset = 0x4, fixed_abs, tag = 'smem constant byte address 0x4 - core index']
  #allocation1 [shape = 'u32[72,128]{1,0:T(1,128)}', space=vmem, size = 0x9000, scoped, tag = 'internal scratch']
  %s0 = inlined_call_operand.hbm [shape: f32[16,128], index: 0, kind: input, shape index: {}]
  %s1 = inlined_call_operand.hbm [shape: f32[128,128], index: 1, kind: input, shape index: {}]
  %s2 = inlined_call_operand.hbm [shape: f32[2,128], index: 2, kind: output, shape index: {}]
  %s3 = sld [smem:[#allocation0]]
  $region26: #{tpu_custom_call.1} parent=0
    _
  %s5 = ssub.s32 1, %s3
  %s6 = scalar_select 0, %s5, %s3
  $region1: #{tpu_custom_call.1} parent=0
    #allocation2 [shape = 'u8[8192]{0}', space=vmem, size = 0x2000, scoped, tag = 'input window, operand 0, single buffered']
    #allocation3 [shape = 's32[1]{0}', space=sflag, size = 0x4, scoped, tag = 'scoped memory for tpu_custom_call.1']
    #allocation4 [shape = 's32[1]{0}', space=sflag, size = 0x4, scoped, tag = 'scoped memory for tpu_custom_call.1']
    #allocation5 [shape = 'u8[65536]{0}', space=vmem, size = 0x10000, scoped, tag = 'input window, operand 1, single buffered']
    #allocation6 [shape = 's32[1]{0}', space=sflag, size = 0x4, scoped, tag = 'scoped memory for tpu_custom_call.1']
    #allocation7 [shape = 'u8[1024]{0}', space=vmem, size = 0x400, scoped, tag = 'output window, operand 0, single buffered']
    %7 = vsyncpa [#allocation3], 0
    %8 = vsyncpa [#allocation6], 0
    %9 = vsyncpa [#allocation4], 0
    // Predicated region
    $region2: #{tpu_custom_call.1} parent=1 // pred_check
      _
    $region3: #{tpu_custom_call.1} parent=1 // pred_check_branch
      %11 = sbr.rel (0) target = $region5
    $region4: #{tpu_custom_call.1} parent=1 // pred_region
      %13 = vsyncadd [#allocation3], 0
      %s14 = sshll.u32 %s0, 4
      %s15 = int_to_ptr.hbm [resolvable:$true] %s14
      %s16 = sshll.u32 [#allocation2], 4
      %s17 = int_to_ptr.vmem [resolvable:$true] %s16
      %22 = dma.hbm_to_vmem [thread:$0]  %s15, 256, %s17, [#allocation3], 128, 128, 8
    $region5: #{tpu_custom_call.1} parent=1 // pred_fallthru
      _
    // Predicated region
    $region6: #{tpu_custom_call.1} parent=1 // pred_check
      _
    $region7: #{tpu_custom_call.1} parent=1 // pred_check_branch
      %24 = sbr.rel (0) target = $region9
    $region8: #{tpu_custom_call.1} parent=1 // pred_region
      %26 = vsyncadd [#allocation6], 0
      %s27 = sshll.u32 %s1, 4
      %s28 = int_to_ptr.hbm [resolvable:$true] %s27
      %s29 = sshll.u32 [#allocation5], 4
      %s30 = int_to_ptr.vmem [resolvable:$true] %s29
      %35 = dma.hbm_to_vmem [thread:$0]  %s28, 2048, %s30, [#allocation6], 128, 128, 8
    $region9: #{tpu_custom_call.1} parent=1 // pred_fallthru
      _
    // Predicated region
    $region10: #{tpu_custom_call.1} parent=1 // pred_check
      _
    $region11: #{tpu_custom_call.1} parent=1 // pred_check_branch
      %37 = sbr.rel (0) target = $region13
    $region12: #{tpu_custom_call.1} parent=1 // pred_region
      %39 = dma.done [#allocation3], 256
    $region13: #{tpu_custom_call.1} parent=1 // pred_fallthru
      _
    // Predicated region
    $region14: #{tpu_custom_call.1} parent=1 // pred_check
      _
    $region15: #{tpu_custom_call.1} parent=1 // pred_check_branch
      %41 = sbr.rel (0) target = $region17
    $region16: #{tpu_custom_call.1} parent=1 // pred_region
      %43 = dma.done [#allocation6], 2048
    $region17: #{tpu_custom_call.1} parent=1 // pred_fallthru
      _
    %v44 = vld [vmem:[#allocation2] sm:$0xff]
    %v45 = vld [vmem:[#allocation2 + $0x8] sm:$0xff]
    %v46 = vld [vmem:[#allocation5] sm:$0xff]
    %v47 = vld [vmem:[#allocation5 + $0x8] sm:$0xff]
    %v48 = vld [vmem:[#allocation5 + $0x10] sm:$0xff]
    %v49 = vld [vmem:[#allocation5 + $0x18] sm:$0xff]
    %v50 = vld [vmem:[#allocation5 + $0x20] sm:$0xff]
    %v51 = vld [vmem:[#allocation5 + $0x28] sm:$0xff]
    %v52 = vld [vmem:[#allocation5 + $0x30] sm:$0xff]
    %54 = vset.pattern.permute.xlu0 16
    %55 = vperm.xlu0 %54, %v46
    %v56 = vpop.permute.xlu0 %55
    %59 = vset.pattern.permute.xlu0 16
    %60 = vperm.xlu0 %59, %v47
    %v61 = vpop.permute.xlu0 %60
    %64 = vset.pattern.permute.xlu0 16
    %65 = vperm.xlu0 %64, %v48
    %v66 = vpop.permute.xlu0 %65
    %69 = vset.pattern.permute.xlu0 16
    %70 = vperm.xlu0 %69, %v49
    %v71 = vpop.permute.xlu0 %70
    %74 = vset.pattern.permute.xlu0 16
    %75 = vperm.xlu0 %74, %v50
    %v76 = vpop.permute.xlu0 %75
    %79 = vset.pattern.permute.xlu0 16
    %80 = vperm.xlu0 %79, %v51
    %v81 = vpop.permute.xlu0 %80
    %84 = vset.pattern.permute.xlu0 16
    %85 = vperm.xlu0 %84, %v52
    %v86 = vpop.permute.xlu0 %85
    %vm88 = vcmask 130048
    %v89 = vsel %vm88, %v46, 0
    %v91 = vsel %vm88, %v47, 0
    %v93 = vsel %vm88, %v48, 0
    %v95 = vsel %vm88, %v49, 0
    %v97 = vsel %vm88, %v50, 0
    %v99 = vsel %vm88, %v51, 0
    %v101 = vsel %vm88, %v52, 0
    %103 = vmatpush.msra.mxu0 0.0
    %104 = vmatpush.msra.mxu0 0.0
    %105 = vmatpush.msra.mxu0 0.0
    %106 = vmatpush.msra.mxu0 0.0
    %107 = vmatpush.msra.mxu0 0.0
    %108 = vmatpush.msra.mxu0 0.0
    %109 = vmatpush.msra.mxu0 0.0
    %110 = vmatpush.msra.mxu0 0.0
    %111 = vmatpush.msra.mxu0 0.0
    %112 = vmatpush.msra.mxu0 0.0
    %113 = vmatpush.msra.mxu0 0.0
    %114 = vmatpush.msra.mxu0 0.0
    %115 = vmatpush.msra.mxu0 0.0
    %116 = vmatpush.msra.mxu0 0.0
    %117 = vmatpush.msra.mxu0 %v45
    %118 = vmatpush.msra.mxu0 %v44
    %119 = vmatmul.f32.gmra.mxu0 %v89
    %v120 = vpop.f32.mrf.mxu0
    %v121 = vadd.f32 %v56, %v120
    %122 = vmatmul.f32.gmra.mxu0 %v91
    %v123 = vpop.f32.mrf.mxu0
    %v124 = vadd.f32 %v61, %v123
    %125 = vmatmul.f32.gmra.mxu0 %v93
    %v126 = vpop.f32.mrf.mxu0
    %v127 = vadd.f32 %v66, %v126
    %128 = vmatmul.f32.gmra.mxu0 %v95
    %v129 = vpop.f32.mrf.mxu0
    %v130 = vadd.f32 %v71, %v129
    %131 = vmatmul.f32.gmra.mxu0 %v97
    %v132 = vpop.f32.mrf.mxu0
    %v133 = vadd.f32 %v76, %v132
    %134 = vmatmul.f32.gmra.mxu0 %v99
    %v135 = vpop.f32.mrf.mxu0
    %v136 = vadd.f32 %v81, %v135
    %137 = vmatmul.f32.gmra.mxu0 %v101
    %v138 = vpop.f32.mrf.mxu0
    %v139 = vadd.f32 %v86, %v138
    %140 = vdwg.mxu0
    %v141 = vmax.f32 %v121, 0.0
    %v142 = vmax.f32 %v124, 0.0
    %v143 = vmax.f32 %v127, 0.0
    %v144 = vmax.f32 %v130, 0.0
    %v145 = vmax.f32 %v133, 0.0
    %v146 = vmax.f32 %v136, 0.0
    %v147 = vmax.f32 %v139, 0.0
    %v148 = vld [vmem:[#allocation5 + $0x38] sm:$0xff]
    %v149 = vld [vmem:[#allocation5 + $0x40] sm:$0xff]
    %v150 = vld [vmem:[#allocation5 + $0x48] sm:$0xff]
    %v151 = vld [vmem:[#allocation5 + $0x50] sm:$0xf]
    %153 = vset.pattern.permute.xlu0 56
    %154 = vperm.xlu0 %153, %v148
    %v155 = vpop.permute.xlu0 %154
    %158 = vset.pattern.permute.xlu0 56
    %159 = vperm.xlu0 %158, %v149
    %v160 = vpop.permute.xlu0 %159
    %163 = vset.pattern.permute.xlu0 56
    %164 = vperm.xlu0 %163, %v150
    %v165 = vpop.permute.xlu0 %164
    %168 = vset.pattern.permute.xlu0 56
    %169 = vperm.xlu0 %168, %v151
    %v170 = vpop.permute.xlu0 %169
    %vm172 = vcmask 457728
    %v173 = vsel %vm172, %v148, 0
    %v175 = vsel %vm172, %v149, 0
    %v177 = vsel %vm172, %v150, 0
    %v179 = vsel %vm172, %v151, 0
    %181 = vmatpush.msra.mxu0 0.0
    %182 = vmatpush.msra.mxu0 0.0
    %183 = vmatpush.msra.mxu0 0.0
    %184 = vmatpush.msra.mxu0 0.0
    %185 = vmatpush.msra.mxu0 0.0
    %186 = vmatpush.msra.mxu0 0.0
    %187 = vmatpush.msra.mxu0 0.0
    %188 = vmatpush.msra.mxu0 0.0
    %189 = vmatpush.msra.mxu0 0.0
    %190 = vmatpush.msra.mxu0 %v147
    %191 = vmatpush.msra.mxu0 %v146
    %192 = vmatpush.msra.mxu0 %v145
    %193 = vmatpush.msra.mxu0 %v144
    %194 = vmatpush.msra.mxu0 %v143
    %195 = vmatpush.msra.mxu0 %v142
    %196 = vmatpush.msra.mxu0 %v141
    %197 = vmatmul.f32.gmra.mxu0 %v173
    %v198 = vpop.f32.mrf.mxu0
    %v199 = vadd.f32 %v155, %v198
    %200 = vmatmul.f32.gmra.mxu0 %v175
    %v201 = vpop.f32.mrf.mxu0
    %v202 = vadd.f32 %v160, %v201
    %203 = vmatmul.f32.gmra.mxu0 %v177
    %v204 = vpop.f32.mrf.mxu0
    %v205 = vadd.f32 %v165, %v204
    %206 = vmatmul.f32.gmra.mxu0 %v179
    %v207 = vpop.f32.mrf.mxu0
    %v208 = vadd.f32 %v170, %v207
    %209 = vdwg.mxu0
    %v210 = vmax.f32 %v199, 0.0
    %v211 = vmax.f32 %v202, 0.0
    %v212 = vmax.f32 %v205, 0.0
    %v213 = vmax.f32 %v208, 0.0
    %v214 = vld [vmem:[#allocation5 + $0x58] sm:$0xff]
    %v215 = vld [vmem:[#allocation5 + $0x60] sm:$0xff]
    %v216 = vld [vmem:[#allocation5 + $0x68] sm:$0xff]
    %v217 = vld [vmem:[#allocation5 + $0x70] sm:$0xf]
    %219 = vset.pattern.permute.xlu0 28
    %220 = vperm.xlu0 %219, %v214
    %v221 = vpop.permute.xlu0 %220
    %224 = vset.pattern.permute.xlu0 28
    %225 = vperm.xlu0 %224, %v215
    %v226 = vpop.permute.xlu0 %225
    %229 = vset.pattern.permute.xlu0 28
    %230 = vperm.xlu0 %229, %v216
    %v231 = vpop.permute.xlu0 %230
    %234 = vset.pattern.permute.xlu0 28
    %235 = vperm.xlu0 %234, %v217
    %v236 = vpop.permute.xlu0 %235
    %vm238 = vcmask 228352
    %v239 = vsel %vm238, %v214, 0
    %v241 = vsel %vm238, %v215, 0
    %v243 = vsel %vm238, %v216, 0
    %v245 = vsel %vm238, %v217, 0
    %vm247 = vcmask 1043456
    %v249 = vsel %vm247, %v213, 0
    %251 = vmatpush.msra.mxu0 0.0
    %252 = vmatpush.msra.mxu0 0.0
    %253 = vmatpush.msra.mxu0 0.0
    %254 = vmatpush.msra.mxu0 0.0
    %255 = vmatpush.msra.mxu0 0.0
    %256 = vmatpush.msra.mxu0 0.0
    %257 = vmatpush.msra.mxu0 0.0
    %258 = vmatpush.msra.mxu0 0.0
    %259 = vmatpush.msra.mxu0 0.0
    %260 = vmatpush.msra.mxu0 0.0
    %261 = vmatpush.msra.mxu0 0.0
    %262 = vmatpush.msra.mxu0 0.0
    %263 = vmatpush.msra.mxu0 %v249
    %264 = vmatpush.msra.mxu0 %v212
    %265 = vmatpush.msra.mxu0 %v211
    %266 = vmatpush.msra.mxu0 %v210
    %267 = vmatmul.f32.gmra.mxu0 %v239
    %v268 = vpop.f32.mrf.mxu0
    %v269 = vadd.f32 %v221, %v268
    %270 = vmatmul.f32.gmra.mxu0 %v241
    %v271 = vpop.f32.mrf.mxu0
    %v272 = vadd.f32 %v226, %v271
    %273 = vmatmul.f32.gmra.mxu0 %v243
    %v274 = vpop.f32.mrf.mxu0
    %v275 = vadd.f32 %v231, %v274
    %276 = vmatmul.f32.gmra.mxu0 %v245
    %v277 = vpop.f32.mrf.mxu0
    %v278 = vadd.f32 %v236, %v277
    %279 = vdwg.mxu0
    %v280 = vmax.f32 %v269, 0.0
    %v281 = vmax.f32 %v272, 0.0
    %v282 = vmax.f32 %v275, 0.0
    %v283 = vmax.f32 %v278, 0.0
    %v284 = vld [vmem:[#allocation5 + $0x78] sm:$0x3]
    %286 = vset.pattern.permute.xlu0 28
    %287 = vperm.xlu0 %286, %v284
    %v288 = vpop.permute.xlu0 %287
    %v290 = vsel %vm238, %v284, 0
    %v293 = vsel %vm247, %v283, 0
    %295 = vmatpush.msra.mxu0 0.0
    %296 = vmatpush.msra.mxu0 0.0
    %297 = vmatpush.msra.mxu0 0.0
    %298 = vmatpush.msra.mxu0 0.0
    %299 = vmatpush.msra.mxu0 0.0
    %300 = vmatpush.msra.mxu0 0.0
    %301 = vmatpush.msra.mxu0 0.0
    %302 = vmatpush.msra.mxu0 0.0
    %303 = vmatpush.msra.mxu0 0.0
    %304 = vmatpush.msra.mxu0 0.0
    %305 = vmatpush.msra.mxu0 0.0
    %306 = vmatpush.msra.mxu0 0.0
    %307 = vmatpush.msra.mxu0 %v293
    %308 = vmatpush.msra.mxu0 %v282
    %309 = vmatpush.msra.mxu0 %v281
    %310 = vmatpush.msra.mxu0 %v280
    %311 = vmatmul.f32.gmra.mxu0 %v290
    %v312 = vpop.f32.mrf.mxu0
    %v313 = vadd.f32 %v288, %v312
    %314 = vdwg.mxu0
    %315 = vst [vmem:[#allocation7] sm:$0x3] %v313
    // Predicated region
    $region18: #{tpu_custom_call.1} parent=1 // pred_check
      _
    $region19: #{tpu_custom_call.1} parent=1 // pred_check_branch
      %317 = sbr.rel (0) target = $region21
    $region20: #{tpu_custom_call.1} parent=1 // pred_region
      %319 = vsyncadd [#allocation4], 0
      %s321 = sshll.u32 [#allocation7], 4
      %s322 = int_to_ptr.vmem [resolvable:$true] %s321
      %s323 = sshll.u32 %s2, 4
      %s324 = int_to_ptr.hbm [resolvable:$true] %s323
      %326 = dma.vmem_to_hbm [thread:$0]  %s322, 32, %s324, [#allocation4]
    $region21: #{tpu_custom_call.1} parent=1 // pred_fallthru
      _
    // Predicated region
    $region22: #{tpu_custom_call.1} parent=1 // pred_check
      _
    $region23: #{tpu_custom_call.1} parent=1 // pred_check_branch
      %328 = sbr.rel (0) target = $region25
    $region24: #{tpu_custom_call.1} parent=1 // pred_region
      %330 = dma.done [#allocation4], 32
    $region25: #{tpu_custom_call.1} parent=1 // pred_fallthru
      _
    %331 = vsyncpa [#allocation3], 1
    %332 = vsyncpa [#allocation6], 1
    %333 = vsyncpa [#allocation4], 1

</llo_original>
